<compile_context>
chip_gen: v5e
topology: v5e:2x2
jax: 0.10.0
libtpu: 0.0.40
codegen_flags: <defaults>
</compile_context>

<pallas_src>
import jax
import jax.numpy as jnp
from jax import lax
from jax.experimental import pallas as pl
from jax.experimental.pallas import tpu as pltpu


# Contract the LAST dim of both operands, no batch dims: the MXU consumes the
# "transposed" operand directly (no in-kernel transpose / XLU work).
_DN_LAST_LAST = (((1,), (1,)), ((), ()))


def _scores_kernel(q_ref, k_ref, o_ref):
    # q_ref : (1, tl, dkp) bf16    k_ref : (1, ts, dkp) bf16    o_ref : (1, tl, ts)
    dots = lax.dot_general(q_ref[0], k_ref[0], _DN_LAST_LAST,
                           preferred_element_type=jnp.float32)   # (tl, ts) f32
    o_ref[0] = dots.astype(o_ref.dtype)


def _round_up(n, m):
    return ((n + m - 1) // m) * m


def _choose_tile(n, target, align):
    """Return (tile, padded_n): tile is an align-multiple, padded_n a tile-multiple."""
    if n <= target:
        t = _round_up(max(n, align), align)
        return t, t
    return target, _round_up(n, target)


def last_layer_pallas(queries, keys, params, n_heads, out_dtype=jnp.float32):
    """queries: (B, L, D), keys: (B, S, D). Returns dots: (B, H, L, S)."""
    B, L, D = queries.shape
    _, S, _ = keys.shape
    H = n_heads
    d_keys = D // H
    scale = float(d_keys) ** -0.5

    # ---- glue: resolve weight-norm into effective weights (f32) ----
    def effective_weight(v, g):
        # PyTorch weight_norm(dim=0) on Linear: w[o,:] = g[o] * v[o,:] / ||v[o,:]||
        norm = jnp.sqrt(jnp.sum(v * v, axis=1, keepdims=True))
        norm = jnp.maximum(norm, 1e-12)   # guard against untrained zero rows
        return g * v / norm

    wq = effective_weight(params["q_v"], params["q_g"])   # (H*dk, D) == (D, D)
    wk = effective_weight(params["k_v"], params["k_g"])   # (D, D)

    # Fold the attention scale into the query projection (weights + bias):
    #   dots = (scale*(q Wq^T + bq)) @ (k Wk^T + bk)^T == scale * qh @ kh^T
    wq_bf = (wq * scale).astype(jnp.bfloat16)
    wk_bf = wk.astype(jnp.bfloat16)
    bq = (params["q_b"] * scale).astype(jnp.float32)
    bk = params["k_b"].astype(jnp.float32)

    # ---- hoisted projections (bf16 inputs, f32 accumulation), done once per token ----
    qh = jnp.einsum("bld,od->blo", queries.astype(jnp.bfloat16), wq_bf,
                    preferred_element_type=jnp.float32) + bq        # (B, L, H*dk) f32
    kh = jnp.einsum("bsd,od->bso", keys.astype(jnp.bfloat16), wk_bf,
                    preferred_element_type=jnp.float32) + bk        # (B, S, H*dk) f32

    # ---- per-generation tile targets & VMEM budget ----
    try:
        vmem_cap = int(pltpu.get_tpu_info().vmem_capacity_bytes)
    except Exception:
        vmem_cap = 64 << 20
    if vmem_cap >= (100 << 20):           # v5e / v6e: 128 MiB physical VMEM
        tl_target, ts_target = 512, 1024
    else:                                 # v7x: 64 MiB per TensorCore
        tl_target, ts_target = 256, 512

    dkp = _round_up(d_keys, 128)          # zero-pad heads to full 128-lane depth
    tl, L_pad = _choose_tile(L, tl_target, 8)
    ts, S_pad = _choose_tile(S, ts_target, 128)
    n_l = L_pad // tl
    n_s = S_pad // ts

    # ---- lay out activations head-major, lane-padded, bf16 ----
    def to_head_major(x, n_tok, n_tok_pad):
        x = x.reshape(B, n_tok, H, d_keys).transpose(0, 2, 1, 3)         # (B,H,T,dk)
        x = jnp.pad(x, ((0, 0), (0, 0), (0, n_tok_pad - n_tok), (0, dkp - d_keys)))
        return x.reshape(B * H, n_tok_pad, dkp).astype(jnp.bfloat16)

    qh_p = to_head_major(qh, L, L_pad)    # (B*H, L_pad, dkp) bf16
    kh_p = to_head_major(kh, S, S_pad)    # (B*H, S_pad, dkp) bf16

    # Explicit VMEM budget from the double-buffered blocks, capped at physical capacity.
    out_itemsize = jnp.dtype(out_dtype).itemsize
    blocks = 2 * (tl * dkp * 2 + ts * dkp * 2 + tl * ts * out_itemsize)
    vmem_limit = int(min(max(blocks + (8 << 20), 32 << 20), vmem_cap))

    out = pl.pallas_call(
        _scores_kernel,
        out_shape=jax.ShapeDtypeStruct((B * H, L_pad, S_pad), out_dtype),
        grid_spec=pltpu.PrefetchScalarGridSpec(
            num_scalar_prefetch=0,
            grid=(B * H, n_l, n_s),
            in_specs=[
                pl.BlockSpec((1, tl, dkp), lambda g, li, si: (g, li, 0)),   # qh
                pl.BlockSpec((1, ts, dkp), lambda g, li, si: (g, si, 0)),   # kh
            ],
            out_specs=pl.BlockSpec((1, tl, ts), lambda g, li, si: (g, li, si)),
        ),
        compiler_params=pltpu.CompilerParams(
            dimension_semantics=("parallel", "parallel", "parallel"),
            vmem_limit_bytes=vmem_limit,
        ),
    )(qh_p, kh_p)

    # Strip padding and restore (B, H, L, S).
    return out[:, :L, :S].reshape(B, H, L, S)


def last_layer_reference(queries, keys, params, n_heads):
    """Pure-JAX f32 reference mirroring the PyTorch forward."""
    B, L, D = queries.shape
    _, S, _ = keys.shape
    H = n_heads
    d_keys = D // H
    scale = float(d_keys) ** -0.5

    def effective_weight(v, g):
        norm = jnp.sqrt(jnp.sum(v * v, axis=1, keepdims=True))
        return g * v / norm

    wq = effective_weight(params["q_v"], params["q_g"])
    wk = effective_weight(params["k_v"], params["k_g"])

    q = queries @ wq.T + params["q_b"]          # (B, L, H*dk)
    k = keys @ wk.T + params["k_b"]             # (B, S, H*dk)
    q = q.reshape(B, L, H, d_keys).transpose(0, 2, 1, 3)   # (B, H, L, dk)
    k = k.reshape(B, S, H, d_keys).transpose(0, 2, 1, 3)   # (B, H, S, dk)
    return jnp.einsum("bhld,bhsd->bhls", q, k) * scale


if __name__ == "__main__":
    # Small shapes consistent with the module: d_model = n_heads * d_keys.
    B, L, S = 2, 8, 8
    d_model, n_heads = 32, 4
    d_keys = d_model // n_heads

    key = jax.random.PRNGKey(0)
    kq, kk, kv1, kg1, kb1, kv2, kg2, kb2 = jax.random.split(key, 8)

    queries = jax.random.normal(kq, (B, L, d_model), dtype=jnp.float32)
    keys = jax.random.normal(kk, (B, S, d_model), dtype=jnp.float32)

    out_dim = d_keys * n_heads
    params = {
        # weight-norm parametrization: v (direction), g (per-row magnitude), bias
        "q_v": jax.random.normal(kv1, (out_dim, d_model), dtype=jnp.float32) * 0.1,
        "q_g": jax.random.normal(kg1, (out_dim, 1), dtype=jnp.float32) * 0.1 + 1.0,
        "q_b": jax.random.normal(kb1, (out_dim,), dtype=jnp.float32) * 0.1,
        "k_v": jax.random.normal(kv2, (out_dim, d_model), dtype=jnp.float32) * 0.1,
        "k_g": jax.random.normal(kg2, (out_dim, 1), dtype=jnp.float32) * 0.1 + 1.0,
        "k_b": jax.random.normal(kb2, (out_dim,), dtype=jnp.float32) * 0.1,
    }

    dots = last_layer_pallas(queries, keys, params, n_heads)
    dots = jax.block_until_ready(dots)

    ref = last_layer_reference(queries, keys, params, n_heads)
    assert dots.shape == (B, n_heads, L, S)
    # bf16 MXU inputs with f32 accumulation -> relaxed tolerance vs f32 reference.
    assert jnp.allclose(dots, ref, atol=5e-2, rtol=5e-2), float(
        jnp.max(jnp.abs(dots - ref)))

    print("KERNEL_OK")
</pallas_src>

<mosaic_0001>
module attributes {stable_mosaic.version = 11 : i64} {
  func.func @_scores_kernel(%arg0: i32, %arg1: i32, %arg2: i32, %arg3: memref<1x8x128xbf16, #tpu.memory_space<vmem>>, %arg4: memref<1x128x128xbf16, #tpu.memory_space<vmem>>, %arg5: memref<1x8x128xf32, #tpu.memory_space<vmem>>) attributes {dimension_semantics = [#tpu.dimension_semantics<parallel>, #tpu.dimension_semantics<parallel>, #tpu.dimension_semantics<parallel>], iteration_bounds = array<i64: 8, 1, 1>, scalar_prefetch = 0 : i64, scratch_operands = 0 : i64, tpu.core_type = #tpu.core_type<tc>, window_params = [{transform_indices = @transform_0, window_bounds = array<i64: 1, 8, 128>}, {transform_indices = @transform_1, window_bounds = array<i64: 1, 128, 128>}, {transform_indices = @transform_2, window_bounds = array<i64: 1, 8, 128>}]} {
    %c0 = arith.constant 0 : index
    %c0_0 = arith.constant 0 : index
    %c0_1 = arith.constant 0 : index
    %0 = vector.load %arg3[%c0, %c0_0, %c0_1] : memref<1x8x128xbf16, #tpu.memory_space<vmem>>, vector<1x8x128xbf16>
    %1 = vector.shape_cast %0 : vector<1x8x128xbf16> to vector<8x128xbf16>
    %c0_2 = arith.constant 0 : index
    %c0_3 = arith.constant 0 : index
    %c0_4 = arith.constant 0 : index
    %2 = vector.load %arg4[%c0_2, %c0_3, %c0_4] : memref<1x128x128xbf16, #tpu.memory_space<vmem>>, vector<1x128x128xbf16>
    %3 = vector.shape_cast %2 : vector<1x128x128xbf16> to vector<128x128xbf16>
    %cst = arith.constant dense<0.000000e+00> : vector<8x128xf32>
    %4 = tpu.matmul %1, %3, %cst {dimension_numbers = #tpu.dot_dimension_numbers<[1], [1], [0], [0], [0, 0, 1, 0], [], []>} : vector<8x128xbf16>, vector<128x128xbf16>, vector<8x128xf32> -> vector<8x128xf32>
    %c0_5 = arith.constant 0 : index
    %c0_6 = arith.constant 0 : index
    %c0_7 = arith.constant 0 : index
    %5 = vector.load %arg5[%c0_5, %c0_6, %c0_7] : memref<1x8x128xf32, #tpu.memory_space<vmem>>, vector<1x8x128xf32>
    %6 = vector.shape_cast %5 : vector<1x8x128xf32> to vector<8x128xf32>
    %7 = vector.shape_cast %4 : vector<8x128xf32> to vector<1x8x128xf32>
    tpu.vector_store %arg5[%c0_5, %c0_6, %c0_7], %7 {strides = array<i32>} : memref<1x8x128xf32, #tpu.memory_space<vmem>>, vector<1x8x128xf32>,
    return
  }
  func.func @transform_0(%arg0: i32, %arg1: i32, %arg2: i32) -> (i32, i32, i32) {
    %c0_i32 = arith.constant 0 : i32
    %c0_i32_0 = arith.constant 0 : i32
    return %arg0, %arg1, %c0_i32 : i32, i32, i32
  }
  func.func @transform_1(%arg0: i32, %arg1: i32, %arg2: i32) -> (i32, i32, i32) {
    %c0_i32 = arith.constant 0 : i32
    %c0_i32_0 = arith.constant 0 : i32
    return %arg0, %arg2, %c0_i32 : i32, i32, i32
  }
  func.func @transform_2(%arg0: i32, %arg1: i32, %arg2: i32) -> (i32, i32, i32) {
    %c0_i32 = arith.constant 0 : i32
    return %arg0, %arg1, %arg2 : i32, i32, i32
  }
}

</mosaic_0001>

<llo_original>
// kernel: tpu_custom_call.1
$region0: #{tpu_custom_call.1}
  #allocation0 [shape = 'u32[]', space=smem, size = 0x4, offset = 0x4, fixed_abs, tag = 'smem constant byte address 0x4 - core index']
  #allocation1 [shape = 'u32[72,128]{1,0:T(1,128)}', space=vmem, size = 0x9000, scoped, tag = 'internal scratch']
  %s0 = inlined_call_operand.hbm [shape: bf16[8,8,128], index: 0, kind: input, shape index: {}]
  %s1 = inlined_call_operand.hbm [shape: bf16[8,128,128], index: 1, kind: input, shape index: {}]
  %s2 = inlined_call_operand.hbm [shape: f32[8,8,128], index: 2, kind: output, shape index: {}]
  %s3 = sld [smem:[#allocation0]]
  $region49: #{tpu_custom_call.1} parent=0
    _
  %s5 = ssub.s32 1, %s3
  %s6 = scalar_select 0, %s5, %s3
  $region1: #{tpu_custom_call.1} parent=0
    #allocation2 [shape = 'u8[4096]{0}', space=vmem, size = 0x1000, scoped, tag = 'input window, operand 0']
    #allocation3 [shape = 's32[2]{0}', space=sflag, size = 0x8, scoped, tag = 'scoped memory for tpu_custom_call.1']
    #allocation4 [shape = 's32[2]{0}', space=sflag, size = 0x8, scoped, tag = 'scoped memory for tpu_custom_call.1']
    #allocation5 [shape = 'u8[65536]{0}', space=vmem, size = 0x10000, scoped, tag = 'input window, operand 1']
    #allocation6 [shape = 's32[2]{0}', space=sflag, size = 0x8, scoped, tag = 'scoped memory for tpu_custom_call.1']
    #allocation7 [shape = 'u8[8192]{0}', space=vmem, size = 0x2000, scoped, tag = 'output window, operand 0']
    %7 = vsyncpa [#allocation3], 0
    %s8 = scalar_lea.sflag [#allocation3], 1
    %9 = vsyncpa %s8, 0
    %10 = vsyncpa [#allocation6], 0
    %s11 = scalar_lea.sflag [#allocation6], 1
    %12 = vsyncpa %s11, 0
    %13 = vsyncpa [#allocation4], 0
    %s14 = scalar_lea.sflag [#allocation4], 1
    %15 = vsyncpa %s14, 0
    loop: start=0, step=1, limit=10
    $region2: #{tpu_custom_call.1} parent=1 // loop_pre_header
      _
    $region3: #{tpu_custom_call.1} parent=1 // loop_header
      %s17 = sphi 0, %s21
      %p18 = scmp.ge.s32.totalorder %s17, 10
      %s24 = sphi 0, %s43
      %s25 = sphi 0, %s39
      %s26 = sphi 0, %s35
      %s27 = sphi 0, %s24
      %s28 = sphi 0, %s25
      %s29 = sphi 0, %s26
      %s30 = sphi 0, %s27
      %s31 = sphi 0, %s28
      %s32 = sphi 0, %s29
      %s48 = sphi 0, %s50
      %s51 = sphi 0, %s48
      %s52 = sphi 0, %s51
      %s68 = sphi 0, %s52
      %s76 = sphi 0, %s78
      %s79 = sphi 0, %s76
      %s80 = sphi 0, %s79
      %s96 = sphi 0, %s80
      %s106 = sphi 0, %s108
      %s109 = sphi 0, %s106
      %s110 = sphi 0, %s109
      %s126 = sphi 0, %s110
    $region4: #{tpu_custom_call.1} parent=1 // loop_header_branch
      %20 = sbr.rel (%p18) target = $region8
    $region5: #{tpu_custom_call.1} parent=1 // loop_body
      %s22 = ssub.s32 %s17, 1
      %s23 = ssub.s32 %s17, 2
      %s33 = sadd.s32 1, %s26
      %p34 = scmp.ge.s32.totalorder %s33, 1
      %s35 = scalar_select %p34, 0, %s33
      %s36 = sadd.s32 1, %s25
      %s37 = scalar_select %p34, %s36, %s25
      %p38 = scmp.ge.s32.totalorder %s37, 1
      %s39 = scalar_select %p38, 0, %s37
      %s40 = sadd.s32 1, %s24
      %s41 = scalar_select %p38, %s40, %s24
      %p42 = scmp.ge.s32.totalorder %s41, 8
      %s43 = scalar_select %p42, 0, %s41
      %s44 = ssub.s32 %s24, %s43
      %s45 = ssub.s32 %s25, %s39
      %s46 = sor.u32 %s44, %s45
      %p47 = scmp.eq.s32.totalorder %s46, 0
      %s49 = sadd.s32 %s48, 1
      %s50 = scalar_select %p47, %s48, %s49
      %p53 = pneg %p47
      %p54 = scmp.eq.s32.totalorder %s17, 7
      %p55 = por %p53, %p54
      %p56 = scmp.ne.s32.totalorder %s48, %s51
      %p57 = scmp.eq.s32.totalorder %s17, 0
      %p58 = por %p56, %p57
      %p59 = scmp.ne.s32.totalorder %s48, %s51
      %p60 = scmp.eq.s32.totalorder %s22, 7
      %p61 = por %p59, %p60
      %p62 = scmp.ne.s32.totalorder %s51, %s52
      %p63 = scmp.eq.s32.totalorder %s22, 0
      %p64 = por %p62, %p63
      %p65 = scmp.ne.s32.totalorder %s51, %s52
      %p66 = scmp.eq.s32.totalorder %s23, 7
      %p67 = por %p65, %p66
      %p69 = scmp.ne.s32.totalorder %s52, %s68
      %p70 = scmp.eq.s32.totalorder %s23, 0
      %p71 = por %p69, %p70
      %s72 = ssub.s32 %s24, %s43
      %s73 = ssub.s32 %s26, %s35
      %s74 = sor.u32 %s72, %s73
      %p75 = scmp.eq.s32.totalorder %s74, 0
      %s77 = sadd.s32 %s76, 1
      %s78 = scalar_select %p75, %s76, %s77
      %p81 = pneg %p75
      %p82 = scmp.eq.s32.totalorder %s17, 7
      %p83 = por %p81, %p82
      %p84 = scmp.ne.s32.totalorder %s76, %s79
      %p85 = scmp.eq.s32.totalorder %s17, 0
      %p86 = por %p84, %p85
      %p87 = scmp.ne.s32.totalorder %s76, %s79
      %p88 = scmp.eq.s32.totalorder %s22, 7
      %p89 = por %p87, %p88
      %p90 = scmp.ne.s32.totalorder %s79, %s80
      %p91 = scmp.eq.s32.totalorder %s22, 0
      %p92 = por %p90, %p91
      %p93 = scmp.ne.s32.totalorder %s79, %s80
      %p94 = scmp.eq.s32.totalorder %s23, 7
      %p95 = por %p93, %p94
      %p97 = scmp.ne.s32.totalorder %s80, %s96
      %p98 = scmp.eq.s32.totalorder %s23, 0
      %p99 = por %p97, %p98
      %s100 = ssub.s32 %s24, %s43
      %s101 = ssub.s32 %s25, %s39
      %s102 = sor.u32 %s100, %s101
      %s103 = ssub.s32 %s26, %s35
      %s104 = sor.u32 %s102, %s103
      %p105 = scmp.eq.s32.totalorder %s104, 0
      %s107 = sadd.s32 %s106, 1
      %s108 = scalar_select %p105, %s106, %s107
      %p111 = pneg %p105
      %p112 = scmp.eq.s32.totalorder %s17, 7
      %p113 = por %p111, %p112
      %p114 = scmp.ne.s32.totalorder %s106, %s109
      %p115 = scmp.eq.s32.totalorder %s17, 0
      %p116 = por %p114, %p115
      %p117 = scmp.ne.s32.totalorder %s106, %s109
      %p118 = scmp.eq.s32.totalorder %s22, 7
      %p119 = por %p117, %p118
      %p120 = scmp.ne.s32.totalorder %s109, %s110
      %p121 = scmp.eq.s32.totalorder %s22, 0
      %p122 = por %p120, %p121
      %p123 = scmp.ne.s32.totalorder %s109, %s110
      %p124 = scmp.eq.s32.totalorder %s23, 7
      %p125 = por %p123, %p124
      %p127 = scmp.ne.s32.totalorder %s110, %s126
      %p128 = scmp.eq.s32.totalorder %s23, 0
      %p129 = por %p127, %p128
      %p130 = scmp.le.s32.totalorder 1, %s17
      %p131 = scmp.lt.s32.totalorder %s17, 9
      %p132 = pnand %p130, %p131
      %p133 = pneg %p132
      // Predicated region
      $region9: #{tpu_custom_call.1} parent=5 // pred_check
        _
      $region10: #{tpu_custom_call.1} parent=5 // pred_check_branch
        %135 = sbr.rel (%p132) target = $region12
      $region11: #{tpu_custom_call.1} parent=5 // pred_region
        %s136 = ssub.s32 %s17, 1
      $region12: #{tpu_custom_call.1} parent=5 // pred_fallthru
        _
      %p137 = scmp.lt.s32.totalorder %s17, 8
      // Predicated region
      $region13: #{tpu_custom_call.1} parent=5 // pred_check
        %p138 = pneg %p137
      $region14: #{tpu_custom_call.1} parent=5 // pred_check_branch
        %140 = sbr.rel (%p138) target = $region16
      $region15: #{tpu_custom_call.1} parent=5 // pred_region
        // Predicated region
        $region17: #{tpu_custom_call.1} parent=15 // pred_check
          %p141 = pneg %p58
        $region18: #{tpu_custom_call.1} parent=15 // pred_check_branch
          %143 = sbr.rel (%p141) target = $region20
        $region19: #{tpu_custom_call.1} parent=15 // pred_region
          %s144 = sand.u32 %s48, 1
          %s145 = scalar_lea.sflag [#allocation3], %s144
          %s146 = sand.u32 %s48, 1
          %s147 = smul.addr %s146, 4
          %s148 = scalar_lea.vmem [#allocation2], %s147
          %150 = vsyncadd %s145, 0
          %s151 = sadd.s32 %s25, %s24
          %s152 = smul.addr %s151, 4
          %s153 = scalar_lea.hbm %s0, %s152
          %s155 = sshll.u32 %s153, 4
          %s156 = int_to_ptr.hbm [resolvable:$true] %s155
          %s157 = sshll.u32 %s148, 4
          %s158 = int_to_ptr.vmem [resolvable:$true] %s157
          %160 = dma.hbm_to_vmem [thread:$0]  %s156, 64, %s158, %s145
        $region20: #{tpu_custom_call.1} parent=15 // pred_fallthru
          _
        // Predicated region
        $region21: #{tpu_custom_call.1} parent=15 // pred_check
          %p161 = pneg %p86
        $region22: #{tpu_custom_call.1} parent=15 // pred_check_branch
          %163 = sbr.rel (%p161) target = $region24
        $region23: #{tpu_custom_call.1} parent=15 // pred_region
          %s164 = sand.u32 %s76, 1
          %s165 = scalar_lea.sflag [#allocation6], %s164
          %s166 = sand.u32 %s76, 1
          %s167 = smul.addr %s166, 64
          %s168 = scalar_lea.vmem [#allocation5], %s167
          %s169 = smul.u32 16, %s26
          %171 = vsyncadd %s165, 0
          %s172 = smul.addr %s24, 16
          %s173 = sadd.s32 %s169, %s172
          %s174 = smul.addr %s173, 4
          %s175 = scalar_lea.hbm %s1, %s174
          %s176 = sshll.u32 %s175, 4
          %s177 = int_to_ptr.hbm [resolvable:$true] %s176
          %s178 = sshll.u32 %s168, 4
          %s179 = int_to_ptr.vmem [resolvable:$true] %s178
          %184 = dma.hbm_to_vmem [thread:$0]  %s177, 1024, %s179, %s165, 64, 64, 4
        $region24: #{tpu_custom_call.1} parent=15 // pred_fallthru
          _
      $region16: #{tpu_custom_call.1} parent=5 // pred_fallthru
        _
      %p185 = scmp.le.s32.totalorder 1, %s17
      %p186 = scmp.lt.s32.totalorder %s17, 9
      %p187 = pnand %p185, %p186
      %p188 = pneg %p187
      // Predicated region
      $region25: #{tpu_custom_call.1} parent=5 // pred_check
        _
      $region26: #{tpu_custom_call.1} parent=5 // pred_check_branch
        %190 = sbr.rel (%p187) target = $region28
      $region27: #{tpu_custom_call.1} parent=5 // pred_region
        %s191 = ssub.s32 %s17, 1
        %s192 = sand.u32 %s51, 1
        %s193 = scalar_lea.sflag [#allocation3], %s192
        %s194 = sand.u32 %s51, 1
        %s195 = smul.addr %s194, 4
        %s196 = scalar_lea.vmem [#allocation2], %s195
        // Predicated region
        $region29: #{tpu_custom_call.1} parent=27 // pred_check
          %p197 = pneg %p64
        $region30: #{tpu_custom_call.1} parent=27 // pred_check_branch
          %199 = sbr.rel (%p197) target = $region32
        $region31: #{tpu_custom_call.1} parent=27 // pred_region
          %201 = dma.done %s193, 64
        $region32: #{tpu_custom_call.1} parent=27 // pred_fallthru
          _
        %s202 = sand.u32 %s79, 1
        %s203 = scalar_lea.sflag [#allocation6], %s202
        %s204 = sand.u32 %s79, 1
        %s205 = smul.addr %s204, 64
        %s206 = scalar_lea.vmem [#allocation5], %s205
        // Predicated region
        $region33: #{tpu_custom_call.1} parent=27 // pred_check
          %p207 = pneg %p92
        $region34: #{tpu_custom_call.1} parent=27 // pred_check_branch
          %209 = sbr.rel (%p207) target = $region36
        $region35: #{tpu_custom_call.1} parent=27 // pred_region
          %211 = dma.done %s203, 1024
        $region36: #{tpu_custom_call.1} parent=27 // pred_fallthru
          _
        %s212 = sand.u32 %s51, 1
        %s213 = scalar_lea.sflag [#allocation3], %s212
        %s214 = sand.u32 %s51, 1
        %s215 = smul.addr %s214, 4
        %s216 = scalar_lea.vmem [#allocation2], %s215
        %p217 = pneg %p64
        %p218 = pneg %p61
        %s219 = sand.u32 %s79, 1
        %s220 = scalar_lea.sflag [#allocation6], %s219
        %s221 = sand.u32 %s79, 1
        %s222 = smul.addr %s221, 64
        %s223 = scalar_lea.vmem [#allocation5], %s222
        %p224 = pneg %p92
        %p225 = pneg %p89
        %p226 = pneg %p122
        %p227 = pneg %p119
        %s228 = sand.u32 %s109, 1
        %s229 = scalar_lea.sflag [#allocation4], %s228
        %s230 = sand.u32 %s109, 1
        %s231 = smul.addr %s230, 8
        %s232 = scalar_lea.vmem [#allocation7], %s231
        %s233 = smul.u32 16, %s29
        %v234 = vld [vmem:[%s196] sm:$0xf]
        %v235 = vld [vmem:[%s206] sm:$0xf]
        %v236 = vld [vmem:[%s206 + $0x4] sm:$0xf]
        %v237 = vld [vmem:[%s206 + $0x8] sm:$0xf]
        %v238 = vld [vmem:[%s206 + $0xc] sm:$0xf]
        %v239 = vld [vmem:[%s206 + $0x10] sm:$0xf]
        %v240 = vld [vmem:[%s206 + $0x14] sm:$0xf]
        %v241 = vld [vmem:[%s206 + $0x18] sm:$0xf]
        %v242 = vld [vmem:[%s206 + $0x1c] sm:$0xf]
        %v243 = vld [vmem:[%s206 + $0x20] sm:$0xf]
        %v244 = vld [vmem:[%s206 + $0x24] sm:$0xf]
        %v245 = vld [vmem:[%s206 + $0x28] sm:$0xf]
        %v246 = vld [vmem:[%s206 + $0x2c] sm:$0xf]
        %v247 = vld [vmem:[%s206 + $0x30] sm:$0xf]
        %v248 = vld [vmem:[%s206 + $0x34] sm:$0xf]
        %v249 = vld [vmem:[%s206 + $0x38] sm:$0xf]
        %v250 = vld [vmem:[%s206 + $0x3c] sm:$0xf]
        %v267 = vunpack.c.l.b16 %v235
        %v268 = vunpack.c.l.b16 %v236
        %v269 = vunpack.c.l.b16 %v237
        %v270 = vunpack.c.l.b16 %v238
        %v271 = vunpack.c.l.b16 %v239
        %v272 = vunpack.c.l.b16 %v240
        %v273 = vunpack.c.l.b16 %v241
        %v274 = vunpack.c.l.b16 %v242
        %v275 = vunpack.c.l.b16 %v243
        %v276 = vunpack.c.l.b16 %v244
        %v277 = vunpack.c.l.b16 %v245
        %v278 = vunpack.c.l.b16 %v246
        %v279 = vunpack.c.l.b16 %v247
        %v280 = vunpack.c.l.b16 %v248
        %v281 = vunpack.c.l.b16 %v249
        %v282 = vunpack.c.l.b16 %v250
        %v283 = vpack.c.b16 %v268, %v267
        %v284 = vpack.c.b16 %v270, %v269
        %v285 = vpack.c.b16 %v272, %v271
        %v286 = vpack.c.b16 %v274, %v273
        %v287 = vpack.c.b16 %v276, %v275
        %v288 = vpack.c.b16 %v278, %v277
        %v289 = vpack.c.b16 %v280, %v279
        %v290 = vpack.c.b16 %v282, %v281
        %299 = vmatpush.bf16.xpose.msra.mxu0 %v290
        %300 = vmatpush.bf16.xpose.msra.mxu0 %v289
        %301 = vmatpush.bf16.xpose.msra.mxu0 %v288
        %302 = vmatpush.bf16.xpose.msra.mxu0 %v287
        %303 = vmatpush.bf16.xpose.msra.mxu0 %v286
        %304 = vmatpush.bf16.xpose.msra.mxu0 %v285
        %305 = vmatpush.bf16.xpose.msra.mxu0 %v284
        %306 = vmatpush.bf16.xpose.msra.mxu0 %v283
        %307 = vmatmul.bf16.gmra.mxu0 %v234
        %v308 = vpop.f32.mrf.mxu0
        %v309 = vadd.f32 0.0, %v308
        %v310 = vpop.f32.mrf.mxu0
        %311 = vdwg.mxu0
        %312 = vst [vmem:[%s232] sm:$0xff] %v309
        %s313 = sand.u32 %s109, 1
        %s314 = scalar_lea.sflag [#allocation4], %s313
        %s315 = sand.u32 %s109, 1
        %s316 = smul.addr %s315, 8
        %s317 = scalar_lea.vmem [#allocation7], %s316
        // Predicated region
        $region37: #{tpu_custom_call.1} parent=27 // pred_check
          %p318 = pneg %p119
        $region38: #{tpu_custom_call.1} parent=27 // pred_check_branch
          %320 = sbr.rel (%p318) target = $region40
        $region39: #{tpu_custom_call.1} parent=27 // pred_region
          %322 = vsyncadd %s314, 0
          %s323 = sadd.s32 %s29, %s28
          %s324 = sadd.s32 %s323, %s27
          %s325 = smul.addr %s324, 8
          %s326 = scalar_lea.hbm %s2, %s325
          %s328 = sshll.u32 %s317, 4
          %s329 = int_to_ptr.vmem [resolvable:$true] %s328
          %s330 = sshll.u32 %s326, 4
          %s331 = int_to_ptr.hbm [resolvable:$true] %s330
          %333 = dma.vmem_to_hbm [thread:$0]  %s329, 128, %s331, %s314
        $region40: #{tpu_custom_call.1} parent=27 // pred_fallthru
          _
      $region28: #{tpu_custom_call.1} parent=5 // pred_fallthru
        _
      %p334 = scmp.le.s32.totalorder 2, %s17
      // Predicated region
      $region41: #{tpu_custom_call.1} parent=5 // pred_check
        %p335 = pneg %p334
      $region42: #{tpu_custom_call.1} parent=5 // pred_check_branch
        %337 = sbr.rel (%p335) target = $region44
      $region43: #{tpu_custom_call.1} parent=5 // pred_region
        %s338 = ssub.s32 %s17, 2
        // Predicated region
        $region45: #{tpu_custom_call.1} parent=43 // pred_check
          %p339 = pneg %p125
        $region46: #{tpu_custom_call.1} parent=43 // pred_check_branch
          %341 = sbr.rel (%p339) target = $region48
        $region47: #{tpu_custom_call.1} parent=43 // pred_region
          %s342 = sand.u32 %s110, 1
          %s343 = scalar_lea.sflag [#allocation4], %s342
          %s344 = sand.u32 %s110, 1
          %s345 = smul.addr %s344, 8
          %s346 = scalar_lea.vmem [#allocation7], %s345
          %348 = dma.done %s343, 128
        $region48: #{tpu_custom_call.1} parent=43 // pred_fallthru
          _
      $region44: #{tpu_custom_call.1} parent=5 // pred_fallthru
        _
    $region6: #{tpu_custom_call.1} parent=1 // loop_footer
      %s21 = sadd.s32 1, %s17
    $region7: #{tpu_custom_call.1} parent=1 // loop_footer_branch
      %16 = sbr.rel target = $region3
    $region8: #{tpu_custom_call.1} parent=1 // loop_exit
      _
    %349 = vsyncpa [#allocation3], 1
    %s350 = scalar_lea.sflag [#allocation3], 1
    %351 = vsyncpa %s350, 1
    %352 = vsyncpa [#allocation6], 1
    %s353 = scalar_lea.sflag [#allocation6], 1
    %354 = vsyncpa %s353, 1
    %355 = vsyncpa [#allocation4], 1
    %s356 = scalar_lea.sflag [#allocation4], 1
    %357 = vsyncpa %s356, 1

</llo_original>
